<compile_context>
chip_gen: v7x
topology: tpu7x:2x2x1
jax: 0.10.0
libtpu: 0.0.40
codegen_flags: <defaults>
</compile_context>

<pallas_src>
import functools

import jax
import jax.numpy as jnp
from jax.experimental import pallas as pl
from jax.experimental.pallas import tpu as pltpu


def _round_up(x, m):
    return ((x + m - 1) // m) * m


def _num_tensorcores_per_chip():
    """Best-effort TensorCores-per-JAX-device detection.

    v2/v3/v5e/v6e expose one TensorCore per device, so splitting a batch that
    already fits in one tile only adds ~0.35us/step overhead there.  v7x (and
    v4/v5p megacore) have 2 TCs that share grid axes marked "parallel".
    """
    try:
        kind = jax.devices()[0].device_kind.lower()
    except Exception:
        return 1
    if any(tag in kind for tag in ("v2", "v3", "lite", "v5e", "v6")):
        return 1
    return 2


def _decoder_kernel(x_ref, w0_ref, b0_ref, w1_ref, b1_ref, o_ref):
    # x_ref:  (TM, E)      batch tile (bf16 or f32)
    # w0_ref: (E, H)       first-layer weight (whole, resident)
    # b0_ref: (1, H)       f32
    # w1_ref: (H, O_pad)   second-layer weight (lane-padded, VMEM-side only)
    # b1_ref: (1, O_pad)   f32
    # o_ref:  (TM, O)      only the real output columns are written to HBM
    h = jnp.dot(x_ref[...], w0_ref[...], preferred_element_type=jnp.float32)
    h = jnp.maximum(h + b0_ref[...], 0.0)                       # bias + ReLU
    y = jnp.dot(h.astype(w1_ref.dtype), w1_ref[...],
                preferred_element_type=jnp.float32)
    y = y + b1_ref[...]
    o_ref[...] = y[:, : o_ref.shape[1]].astype(o_ref.dtype)


@functools.partial(
    jax.jit,
    static_argnames=("tile_m", "use_bf16", "out_dtype", "weight_buffers", "num_tc"),
)
def _decoder_forward_impl(x, w0, b0, w1, b1, *, tile_m, use_bf16, out_dtype,
                          weight_buffers, num_tc):
    B, E = x.shape
    H = w0.shape[1]
    O = w1.shape[1]
    out_dt = jnp.dtype(out_dtype)

    # MXU-friendly N for the second matmul: pad w1/b1 to a multiple of 128.
    # This padding never reaches HBM on the output side (kernel stores y[:, :O]).
    O_pad = _round_up(O, 128)
    if O_pad != O:
        w1 = jnp.pad(w1, ((0, 0), (0, O_pad - O)))
        b1 = jnp.pad(b1, ((0, 0), (0, O_pad - O)))

    # Mixed precision: bf16 operands on the MXU, f32 accumulation & biases.
    if use_bf16:
        x = x.astype(jnp.bfloat16)
        w0 = w0.astype(jnp.bfloat16)
        w1 = w1.astype(jnp.bfloat16)
    b0 = b0.astype(jnp.float32)
    b1 = b1.astype(jnp.float32)

    # ---- Batch tiling -------------------------------------------------------
    # One big tile when the batch fits (cap 2048); on 2-TC parts aim for an
    # EVEN number of grid steps so both TensorCores get equal work.
    tm = max(8, min(int(tile_m), 2048))
    tm = min(tm, _round_up(B, 8))
    if num_tc >= 2 and B > 8:
        steps = pl.cdiv(B, tm)
        if steps % 2 != 0:
            target = steps + 1
            tm = max(8, _round_up(pl.cdiv(B, target), 8))
    grid = (pl.cdiv(B, tm),)

    in_itm = jnp.dtype(x.dtype).itemsize
    w_itm = jnp.dtype(w0.dtype).itemsize
    out_itm = out_dt.itemsize

    # Advisory cost estimate for XLA's scheduler.
    cost = pl.CostEstimate(
        flops=2 * B * E * H + 2 * B * H * O_pad,
        transcendentals=0,
        bytes_accessed=(B * E * in_itm + E * H * w_itm + H * 4
                        + H * O_pad * w_itm + O_pad * 4 + B * O * out_itm),
    )

    # Tight VMEM budget: ~2x the computed working set plus a small headroom for
    # compiler-internal scratch, instead of reserving 32-64 MiB scoped VMEM.
    vmem_bytes = (
        2 * tm * E * in_itm                              # x tile, double-buffered
        + 2 * tm * O * out_itm                           # out tile, double-buffered
        + weight_buffers * (E * H + H * O_pad) * w_itm   # resident weights
        + weight_buffers * (H + O_pad) * 4               # resident biases (f32)
        + tm * H * 4 + tm * O_pad * 4                    # f32 intermediates h, y
    )
    vmem_limit = int(min(64 * 1024 * 1024, 2 * vmem_bytes + 4 * 1024 * 1024))

    def const_spec(shape):
        idx = lambda i: (0,) * len(shape)
        if weight_buffers == 1:
            # Grid-invariant block: a single VMEM buffer is enough.
            return pl.BlockSpec(shape, idx, pipeline_mode=pl.Buffered(1))
        return pl.BlockSpec(shape, idx)

    return pl.pallas_call(
        _decoder_kernel,
        out_shape=jax.ShapeDtypeStruct((B, O), out_dt),
        grid_spec=pltpu.PrefetchScalarGridSpec(
            num_scalar_prefetch=0,
            grid=grid,
            in_specs=[
                pl.BlockSpec((tm, E), lambda i: (i, 0)),   # x tile over batch
                const_spec((E, H)),                        # w0 (whole, resident)
                const_spec((1, H)),                        # b0
                const_spec((H, O_pad)),                    # w1 (whole, resident)
                const_spec((1, O_pad)),                    # b1
            ],
            out_specs=pl.BlockSpec((tm, O), lambda i: (i, 0)),
        ),
        compiler_params=pltpu.CompilerParams(
            dimension_semantics=("parallel",),
            vmem_limit_bytes=vmem_limit),
        cost_estimate=cost,
    )(x, w0, b0, w1, b1)


def decoder_forward(x, w0, b0, w1, b1, *, tile_m=2048, use_bf16=True,
                    out_dtype=None):
    """Fused Linear -> ReLU -> Linear.  x: [B, emb] -> [B, out_size]."""
    out_dt = jnp.dtype(out_dtype) if out_dtype is not None else jnp.dtype(x.dtype)
    num_tc = _num_tensorcores_per_chip()
    kwargs = dict(tile_m=int(tile_m), use_bf16=bool(use_bf16),
                  out_dtype=out_dt.name, num_tc=num_tc)
    try:
        # Preferred: single-buffer the grid-invariant weights/biases.
        return _decoder_forward_impl(x, w0, b0, w1, b1,
                                     weight_buffers=1, **kwargs)
    except Exception:
        # Fallback if this Pallas version rejects pl.Buffered(1): default
        # double-buffered resident weights (identical numerics).
        return _decoder_forward_impl(x, w0, b0, w1, b1,
                                     weight_buffers=2, **kwargs)


def init_decoder_params(key, emb_size, out_size, hidden_size=128,
                        dtype=jnp.float32):
    """Deterministic synthetic params, shapes matching nn.Linear (stored
    transposed: [in, out])."""
    k0, k1, k2, k3 = jax.random.split(key, 4)
    w0 = jax.random.uniform(k0, (emb_size, hidden_size), dtype,
                            minval=-1.0, maxval=1.0) / jnp.sqrt(emb_size)
    b0 = jax.random.uniform(k1, (1, hidden_size), dtype,
                            minval=-1.0, maxval=1.0) / jnp.sqrt(emb_size)
    w1 = jax.random.uniform(k2, (hidden_size, out_size), dtype,
                            minval=-1.0, maxval=1.0) / jnp.sqrt(hidden_size)
    b1 = jax.random.uniform(k3, (1, out_size), dtype,
                            minval=-1.0, maxval=1.0) / jnp.sqrt(hidden_size)
    return w0, b0, w1, b1


def decoder_ref(x, w0, b0, w1, b1, use_bf16=True):
    """Pure-JAX reference matching PyTorch semantics (mirrors the kernel's
    optional bf16 operand rounding with f32 accumulation)."""
    if use_bf16:
        x = x.astype(jnp.bfloat16).astype(jnp.float32)
        w0 = w0.astype(jnp.bfloat16).astype(jnp.float32)
        w1 = w1.astype(jnp.bfloat16).astype(jnp.float32)
    h = jnp.maximum(x @ w0 + b0, 0.0)
    if use_bf16:
        h = h.astype(jnp.bfloat16).astype(jnp.float32)
    return h @ w1 + b1


if __name__ == "__main__":
    emb_size = 32
    hidden_size = 128
    out_size = 16
    batch = 256

    key = jax.random.PRNGKey(0)
    kx, kp = jax.random.split(key)
    x = jax.random.normal(kx, (batch, emb_size), dtype=jnp.float32)
    w0, b0, w1, b1 = init_decoder_params(kp, emb_size, out_size, hidden_size)

    # Default mixed-precision path (bf16 operands, f32 accumulation, f32 out).
    out_mp = jax.block_until_ready(decoder_forward(x, w0, b0, w1, b1,
                                                   use_bf16=True))
    ref_mp = decoder_ref(x, w0, b0, w1, b1, use_bf16=True)
    assert out_mp.shape == (batch, out_size) and out_mp.dtype == x.dtype
    assert jnp.allclose(out_mp, ref_mp, atol=2e-2, rtol=2e-2), \
        "bf16-operand path mismatch vs reference"

    # Full-f32 path.
    out_f32 = jax.block_until_ready(decoder_forward(x, w0, b0, w1, b1,
                                                    use_bf16=False))
    ref_f32 = decoder_ref(x, w0, b0, w1, b1, use_bf16=False)
    assert jnp.allclose(out_f32, ref_f32, atol=2e-2, rtol=2e-2), \
        "f32 path mismatch vs reference"

    # Optional bf16 output (halves the dominant HBM write stream).
    out_b16 = jax.block_until_ready(
        decoder_forward(x, w0, b0, w1, b1, use_bf16=True,
                        out_dtype=jnp.bfloat16))
    assert out_b16.shape == (batch, out_size) and out_b16.dtype == jnp.bfloat16
    assert jnp.allclose(out_b16.astype(jnp.float32), ref_mp,
                        atol=5e-2, rtol=5e-2), "bf16-output path mismatch"

    # TODO(synk): nn.Dropout(0.3) is declared in __init__ but never applied in
    # forward(), so it is intentionally not implemented here.
    print("KERNEL_OK")
</pallas_src>

<mosaic_0001>
module attributes {stable_mosaic.version = 11 : i64} {
  func.func @_decoder_kernel(%arg0: i32, %arg1: memref<128x32xbf16, #tpu.memory_space<vmem>>, %arg2: memref<32x128xbf16, #tpu.memory_space<vmem>>, %arg3: memref<1x128xf32, #tpu.memory_space<vmem>>, %arg4: memref<128x128xbf16, #tpu.memory_space<vmem>>, %arg5: memref<1x128xf32, #tpu.memory_space<vmem>>, %arg6: memref<128x16xf32, #tpu.memory_space<vmem>>) attributes {dimension_semantics = [#tpu.dimension_semantics<parallel>], iteration_bounds = array<i64: 2>, scalar_prefetch = 0 : i64, scratch_operands = 0 : i64, tpu.core_type = #tpu.core_type<tc>, window_params = [{transform_indices = @transform_0, window_bounds = array<i64: 128, 32>}, {pipeline_mode = #tpu.pipeline_mode<synchronous>, transform_indices = @transform_1, window_bounds = array<i64: 32, 128>}, {pipeline_mode = #tpu.pipeline_mode<synchronous>, transform_indices = @transform_2, window_bounds = array<i64: 1, 128>}, {pipeline_mode = #tpu.pipeline_mode<synchronous>, transform_indices = @transform_3, window_bounds = array<i64: 128, 128>}, {pipeline_mode = #tpu.pipeline_mode<synchronous>, transform_indices = @transform_4, window_bounds = array<i64: 1, 128>}, {transform_indices = @transform_5, window_bounds = array<i64: 128, 16>}]} {
    %c0 = arith.constant 0 : index
    %c0_0 = arith.constant 0 : index
    %0 = vector.load %arg1[%c0, %c0_0] : memref<128x32xbf16, #tpu.memory_space<vmem>>, vector<128x32xbf16>
    %c0_1 = arith.constant 0 : index
    %c0_2 = arith.constant 0 : index
    %1 = vector.load %arg2[%c0_1, %c0_2] : memref<32x128xbf16, #tpu.memory_space<vmem>>, vector<32x128xbf16>
    %cst = arith.constant dense<0.000000e+00> : vector<128x128xf32>
    %2 = tpu.matmul %0, %1, %cst {dimension_numbers = #tpu.dot_dimension_numbers<[1], [0], [0], [1], [0, 0, 1, 1], [], []>} : vector<128x32xbf16>, vector<32x128xbf16>, vector<128x128xf32> -> vector<128x128xf32>
    %c0_3 = arith.constant 0 : index
    %c0_4 = arith.constant 0 : index
    %3 = vector.load %arg3[%c0_3, %c0_4] : memref<1x128xf32, #tpu.memory_space<vmem>>, vector<1x128xf32>
    %4 = vector.broadcast %3 : vector<1x128xf32> to vector<128x128xf32>
    %5 = arith.addf %2, %4 : vector<128x128xf32>
    %cst_5 = arith.constant 0.000000e+00 : f32
    %6 = vector.broadcast %cst_5 : f32 to vector<128x128xf32>
    %7 = arith.maximumf %5, %6 : vector<128x128xf32>
    %8 = arith.truncf %7 : vector<128x128xf32> to vector<128x128xbf16>
    %c0_6 = arith.constant 0 : index
    %c0_7 = arith.constant 0 : index
    %9 = vector.load %arg4[%c0_6, %c0_7] : memref<128x128xbf16, #tpu.memory_space<vmem>>, vector<128x128xbf16>
    %cst_8 = arith.constant dense<0.000000e+00> : vector<128x128xf32>
    %10 = tpu.matmul %8, %9, %cst_8 {dimension_numbers = #tpu.dot_dimension_numbers<[1], [0], [0], [1], [0, 0, 1, 1], [], []>} : vector<128x128xbf16>, vector<128x128xbf16>, vector<128x128xf32> -> vector<128x128xf32>
    %c0_9 = arith.constant 0 : index
    %c0_10 = arith.constant 0 : index
    %11 = vector.load %arg5[%c0_9, %c0_10] : memref<1x128xf32, #tpu.memory_space<vmem>>, vector<1x128xf32>
    %12 = vector.broadcast %11 : vector<1x128xf32> to vector<128x128xf32>
    %13 = arith.addf %10, %12 : vector<128x128xf32>
    %14 = vector.extract_strided_slice %13 {offsets = [0, 0], sizes = [128, 16], strides = [1, 1]} : vector<128x128xf32> to vector<128x16xf32>
    %c0_11 = arith.constant 0 : index
    %c0_12 = arith.constant 0 : index
    %15 = vector.load %arg6[%c0_11, %c0_12] : memref<128x16xf32, #tpu.memory_space<vmem>>, vector<128x16xf32>
    tpu.vector_store %arg6[%c0_11, %c0_12], %14 {strides = array<i32>} : memref<128x16xf32, #tpu.memory_space<vmem>>, vector<128x16xf32>,
    return
  }
  func.func @transform_0(%arg0: i32) -> (i32, i32) {
    %c0_i32 = arith.constant 0 : i32
    %c0_i32_0 = arith.constant 0 : i32
    return %arg0, %c0_i32 : i32, i32
  }
  func.func @transform_1(%arg0: i32) -> (i32, i32) {
    %c0_i32 = arith.constant 0 : i32
    %c0_i32_0 = arith.constant 0 : i32
    %c0_i32_1 = arith.constant 0 : i32
    return %c0_i32, %c0_i32_0 : i32, i32
  }
  func.func @transform_2(%arg0: i32) -> (i32, i32) {
    %c0_i32 = arith.constant 0 : i32
    %c0_i32_0 = arith.constant 0 : i32
    %c0_i32_1 = arith.constant 0 : i32
    return %c0_i32, %c0_i32_0 : i32, i32
  }
  func.func @transform_3(%arg0: i32) -> (i32, i32) {
    %c0_i32 = arith.constant 0 : i32
    %c0_i32_0 = arith.constant 0 : i32
    %c0_i32_1 = arith.constant 0 : i32
    return %c0_i32, %c0_i32_0 : i32, i32
  }
  func.func @transform_4(%arg0: i32) -> (i32, i32) {
    %c0_i32 = arith.constant 0 : i32
    %c0_i32_0 = arith.constant 0 : i32
    %c0_i32_1 = arith.constant 0 : i32
    return %c0_i32, %c0_i32_0 : i32, i32
  }
  func.func @transform_5(%arg0: i32) -> (i32, i32) {
    %c0_i32 = arith.constant 0 : i32
    %c0_i32_0 = arith.constant 0 : i32
    return %arg0, %c0_i32 : i32, i32
  }
}

module attributes {stable_mosaic.version = 11 : i64} {
  func.func @_decoder_kernel(%arg0: i32, %arg1: memref<128x32xbf16, #tpu.memory_space<vmem>>, %arg2: memref<32x128xbf16, #tpu.memory_space<vmem>>, %arg3: memref<1x128xf32, #tpu.memory_space<vmem>>, %arg4: memref<128x128xbf16, #tpu.memory_space<vmem>>, %arg5: memref<1x128xf32, #tpu.memory_space<vmem>>, %arg6: memref<128x16xf32, #tpu.memory_space<vmem>>) attributes {dimension_semantics = [#tpu.dimension_semantics<parallel>], iteration_bounds = array<i64: 2>, scalar_prefetch = 0 : i64, scratch_operands = 0 : i64, tpu.core_type = #tpu.core_type<tc>, window_params = [{transform_indices = @transform_0, window_bounds = array<i64: 128, 32>}, {pipeline_mode = #tpu.pipeline_mode<synchronous>, transform_indices = @transform_1, window_bounds = array<i64: 32, 128>}, {pipeline_mode = #tpu.pipeline_mode<synchronous>, transform_indices = @transform_2, window_bounds = array<i64: 1, 128>}, {pipeline_mode = #tpu.pipeline_mode<synchronous>, transform_indices = @transform_3, window_bounds = array<i64: 128, 128>}, {pipeline_mode = #tpu.pipeline_mode<synchronous>, transform_indices = @transform_4, window_bounds = array<i64: 1, 128>}, {transform_indices = @transform_5, window_bounds = array<i64: 128, 16>}]} {
    %c0 = arith.constant 0 : index
    %c0_0 = arith.constant 0 : index
    %0 = vector.load %arg1[%c0, %c0_0] : memref<128x32xbf16, #tpu.memory_space<vmem>>, vector<128x32xbf16>
    %c0_1 = arith.constant 0 : index
    %c0_2 = arith.constant 0 : index
    %1 = vector.load %arg2[%c0_1, %c0_2] : memref<32x128xbf16, #tpu.memory_space<vmem>>, vector<32x128xbf16>
    %cst = arith.constant dense<0.000000e+00> : vector<128x128xf32>
    %2 = tpu.matmul %0, %1, %cst {dimension_numbers = #tpu.dot_dimension_numbers<[1], [0], [0], [1], [0, 0, 1, 1], [], []>} : vector<128x32xbf16>, vector<32x128xbf16>, vector<128x128xf32> -> vector<128x128xf32>
    %c0_3 = arith.constant 0 : index
    %c0_4 = arith.constant 0 : index
    %3 = vector.load %arg3[%c0_3, %c0_4] : memref<1x128xf32, #tpu.memory_space<vmem>>, vector<1x128xf32>
    %4 = vector.broadcast %3 : vector<1x128xf32> to vector<128x128xf32>
    %5 = arith.addf %2, %4 : vector<128x128xf32>
    %cst_5 = arith.constant 0.000000e+00 : f32
    %6 = vector.broadcast %cst_5 : f32 to vector<128x128xf32>
    %7 = arith.maximumf %5, %6 : vector<128x128xf32>
    %8 = arith.truncf %7 : vector<128x128xf32> to vector<128x128xbf16>
    %c0_6 = arith.constant 0 : index
    %c0_7 = arith.constant 0 : index
    %9 = vector.load %arg4[%c0_6, %c0_7] : memref<128x128xbf16, #tpu.memory_space<vmem>>, vector<128x128xbf16>
    %cst_8 = arith.constant dense<0.000000e+00> : vector<128x128xf32>
    %10 = tpu.matmul %8, %9, %cst_8 {dimension_numbers = #tpu.dot_dimension_numbers<[1], [0], [0], [1], [0, 0, 1, 1], [], []>} : vector<128x128xbf16>, vector<128x128xbf16>, vector<128x128xf32> -> vector<128x128xf32>
    %c0_9 = arith.constant 0 : index
    %c0_10 = arith.constant 0 : index
    %11 = vector.load %arg5[%c0_9, %c0_10] : memref<1x128xf32, #tpu.memory_space<vmem>>, vector<1x128xf32>
    %12 = vector.broadcast %11 : vector<1x128xf32> to vector<128x128xf32>
    %13 = arith.addf %10, %12 : vector<128x128xf32>
    %14 = vector.extract_strided_slice %13 {offsets = [0, 0], sizes = [128, 16], strides = [1, 1]} : vector<128x128xf32> to vector<128x16xf32>
    %c0_11 = arith.constant 0 : index
    %c0_12 = arith.constant 0 : index
    %15 = vector.load %arg6[%c0_11, %c0_12] : memref<128x16xf32, #tpu.memory_space<vmem>>, vector<128x16xf32>
    tpu.vector_store %arg6[%c0_11, %c0_12], %14 {strides = array<i32>} : memref<128x16xf32, #tpu.memory_space<vmem>>, vector<128x16xf32>,
    return
  }
  func.func @transform_0(%arg0: i32) -> (i32, i32) {
    %c0_i32 = arith.constant 0 : i32
    %c0_i32_0 = arith.constant 0 : i32
    return %arg0, %c0_i32 : i32, i32
  }
  func.func @transform_1(%arg0: i32) -> (i32, i32) {
    %c0_i32 = arith.constant 0 : i32
    %c0_i32_0 = arith.constant 0 : i32
    %c0_i32_1 = arith.constant 0 : i32
    return %c0_i32, %c0_i32_0 : i32, i32
  }
  func.func @transform_2(%arg0: i32) -> (i32, i32) {
    %c0_i32 = arith.constant 0 : i32
    %c0_i32_0 = arith.constant 0 : i32
    %c0_i32_1 = arith.constant 0 : i32
    return %c0_i32, %c0_i32_0 : i32, i32
  }
  func.func @transform_3(%arg0: i32) -> (i32, i32) {
    %c0_i32 = arith.constant 0 : i32
    %c0_i32_0 = arith.constant 0 : i32
    %c0_i32_1 = arith.constant 0 : i32
    return %c0_i32, %c0_i32_0 : i32, i32
  }
  func.func @transform_4(%arg0: i32) -> (i32, i32) {
    %c0_i32 = arith.constant 0 : i32
    %c0_i32_0 = arith.constant 0 : i32
    %c0_i32_1 = arith.constant 0 : i32
    return %c0_i32, %c0_i32_0 : i32, i32
  }
  func.func @transform_5(%arg0: i32) -> (i32, i32) {
    %c0_i32 = arith.constant 0 : i32
    %c0_i32_0 = arith.constant 0 : i32
    return %arg0, %c0_i32 : i32, i32
  }
}

</mosaic_0001>

<llo_original>
// kernel: _decoder_forward_impl.1
$region0: #{_decoder_forward_impl.1}
  #allocation0 [shape = 'u32[]', space=smem, size = 0x4, offset = 0x4, fixed_abs, tag = 'smem constant byte address 0x4 - core index']
  #allocation1 [shape = 'u32[144,128]{1,0:T(1,128)}', space=vmem, size = 0x12000, scoped, tag = 'internal scratch']
  %s0 = inlined_call_operand.vmem [shape: bf16[256,32], index: 0, kind: input, shape index: {}]
  %s1 = inlined_call_operand.vmem [shape: bf16[32,128], index: 1, kind: input, shape index: {}]
  %s2 = inlined_call_operand.vmem [shape: f32[1,128], index: 2, kind: input, shape index: {}]
  %s3 = inlined_call_operand.vmem [shape: bf16[128,128], index: 3, kind: input, shape index: {}]
  %s4 = inlined_call_operand.vmem [shape: f32[1,128], index: 4, kind: input, shape index: {}]
  %s5 = inlined_call_operand.vmem [shape: f32[256,16], index: 5, kind: output, shape index: {}]
  %s6 = sld [smem:[#allocation0]]
  $region53: #{_decoder_forward_impl.1} parent=0
    _
  %s8 = ssub.s32 1, %s6
  %s9 = scalar_select 0, %s8, %s6
  loop: start=0, step=1, limit=4
  $region2: #{_decoder_forward_impl.1} parent=0 // loop_pre_header
    _
  $region3: #{_decoder_forward_impl.1} parent=0 // loop_header
    %s11 = sphi 0, %s15
    %p12 = scmp.ge.s32.totalorder %s11, 4
    %s21 = sphi 0, %s23
    %s24 = sphi 0, %s21
    %s25 = sphi 0, %s24
    %s41 = sphi 0, %s25
    %s45 = sphi 0, %s45
    %s47 = sphi 0, %s45
    %s48 = sphi 0, %s47
    %s62 = sphi 0, %s48
    %s66 = sphi 0, %s66
    %s68 = sphi 0, %s66
    %s69 = sphi 0, %s68
    %s83 = sphi 0, %s69
    %s87 = sphi 0, %s87
    %s89 = sphi 0, %s87
    %s90 = sphi 0, %s89
    %s104 = sphi 0, %s90
    %s108 = sphi 0, %s108
    %s110 = sphi 0, %s108
    %s111 = sphi 0, %s110
    %s125 = sphi 0, %s111
    %s131 = sphi 0, %s133
    %s134 = sphi 0, %s131
    %s135 = sphi 0, %s134
    %s151 = sphi 0, %s135
  $region4: #{_decoder_forward_impl.1} parent=0 // loop_header_branch
    %14 = sbr.rel (%p12) target = $region8
  $region5: #{_decoder_forward_impl.1} parent=0 // loop_body
    %s16 = ssub.s32 %s11, 1
    %s17 = ssub.s32 %s11, 2
    %s18 = sadd.s32 %s11, 1
    %s19 = ssub.s32 %s11, %s18
    %p20 = scmp.eq.s32.totalorder %s19, 0
    %s22 = sadd.s32 %s21, 1
    %s23 = scalar_select %p20, %s21, %s22
    %p26 = pneg %p20
    %p27 = scmp.eq.s32.totalorder %s11, 1
    %p28 = por %p26, %p27
    %p29 = scmp.ne.s32.totalorder %s21, %s24
    %p30 = scmp.eq.s32.totalorder %s11, 0
    %p31 = por %p29, %p30
    %p32 = scmp.ne.s32.totalorder %s21, %s24
    %p33 = scmp.eq.s32.totalorder %s16, 1
    %p34 = por %p32, %p33
    %p35 = scmp.ne.s32.totalorder %s24, %s25
    %p36 = scmp.eq.s32.totalorder %s16, 0
    %p37 = por %p35, %p36
    %p38 = scmp.ne.s32.totalorder %s24, %s25
    %p39 = scmp.eq.s32.totalorder %s17, 1
    %p40 = por %p38, %p39
    %p42 = scmp.ne.s32.totalorder %s25, %s41
    %p43 = scmp.eq.s32.totalorder %s17, 0
    %p44 = por %p42, %p43
    %s46 = sadd.s32 %s45, 1
    %p49 = scmp.eq.s32.totalorder %s11, 1
    %p50 = scmp.ne.s32.totalorder %s45, %s47
    %p51 = scmp.eq.s32.totalorder %s11, 0
    %p52 = por %p50, %p51
    %p53 = scmp.ne.s32.totalorder %s45, %s47
    %p54 = scmp.eq.s32.totalorder %s16, 1
    %p55 = por %p53, %p54
    %p56 = scmp.ne.s32.totalorder %s47, %s48
    %p57 = scmp.eq.s32.totalorder %s16, 0
    %p58 = por %p56, %p57
    %p59 = scmp.ne.s32.totalorder %s47, %s48
    %p60 = scmp.eq.s32.totalorder %s17, 1
    %p61 = por %p59, %p60
    %p63 = scmp.ne.s32.totalorder %s48, %s62
    %p64 = scmp.eq.s32.totalorder %s17, 0
    %p65 = por %p63, %p64
    %s67 = sadd.s32 %s66, 1
    %p70 = scmp.eq.s32.totalorder %s11, 1
    %p71 = scmp.ne.s32.totalorder %s66, %s68
    %p72 = scmp.eq.s32.totalorder %s11, 0
    %p73 = por %p71, %p72
    %p74 = scmp.ne.s32.totalorder %s66, %s68
    %p75 = scmp.eq.s32.totalorder %s16, 1
    %p76 = por %p74, %p75
    %p77 = scmp.ne.s32.totalorder %s68, %s69
    %p78 = scmp.eq.s32.totalorder %s16, 0
    %p79 = por %p77, %p78
    %p80 = scmp.ne.s32.totalorder %s68, %s69
    %p81 = scmp.eq.s32.totalorder %s17, 1
    %p82 = por %p80, %p81
    %p84 = scmp.ne.s32.totalorder %s69, %s83
    %p85 = scmp.eq.s32.totalorder %s17, 0
    %p86 = por %p84, %p85
    %s88 = sadd.s32 %s87, 1
    %p91 = scmp.eq.s32.totalorder %s11, 1
    %p92 = scmp.ne.s32.totalorder %s87, %s89
    %p93 = scmp.eq.s32.totalorder %s11, 0
    %p94 = por %p92, %p93
    %p95 = scmp.ne.s32.totalorder %s87, %s89
    %p96 = scmp.eq.s32.totalorder %s16, 1
    %p97 = por %p95, %p96
    %p98 = scmp.ne.s32.totalorder %s89, %s90
    %p99 = scmp.eq.s32.totalorder %s16, 0
    %p100 = por %p98, %p99
    %p101 = scmp.ne.s32.totalorder %s89, %s90
    %p102 = scmp.eq.s32.totalorder %s17, 1
    %p103 = por %p101, %p102
    %p105 = scmp.ne.s32.totalorder %s90, %s104
    %p106 = scmp.eq.s32.totalorder %s17, 0
    %p107 = por %p105, %p106
    %s109 = sadd.s32 %s108, 1
    %p112 = scmp.eq.s32.totalorder %s11, 1
    %p113 = scmp.ne.s32.totalorder %s108, %s110
    %p114 = scmp.eq.s32.totalorder %s11, 0
    %p115 = por %p113, %p114
    %p116 = scmp.ne.s32.totalorder %s108, %s110
    %p117 = scmp.eq.s32.totalorder %s16, 1
    %p118 = por %p116, %p117
    %p119 = scmp.ne.s32.totalorder %s110, %s111
    %p120 = scmp.eq.s32.totalorder %s16, 0
    %p121 = por %p119, %p120
    %p122 = scmp.ne.s32.totalorder %s110, %s111
    %p123 = scmp.eq.s32.totalorder %s17, 1
    %p124 = por %p122, %p123
    %p126 = scmp.ne.s32.totalorder %s111, %s125
    %p127 = scmp.eq.s32.totalorder %s17, 0
    %p128 = por %p126, %p127
    %s129 = ssub.s32 %s11, %s18
    %p130 = scmp.eq.s32.totalorder %s129, 0
    %s132 = sadd.s32 %s131, 1
    %s133 = scalar_select %p130, %s131, %s132
    %p136 = pneg %p130
    %p137 = scmp.eq.s32.totalorder %s11, 1
    %p138 = por %p136, %p137
    %p139 = scmp.ne.s32.totalorder %s131, %s134
    %p140 = scmp.eq.s32.totalorder %s11, 0
    %p141 = por %p139, %p140
    %p142 = scmp.ne.s32.totalorder %s131, %s134
    %p143 = scmp.eq.s32.totalorder %s16, 1
    %p144 = por %p142, %p143
    %p145 = scmp.ne.s32.totalorder %s134, %s135
    %p146 = scmp.eq.s32.totalorder %s16, 0
    %p147 = por %p145, %p146
    %p148 = scmp.ne.s32.totalorder %s134, %s135
    %p149 = scmp.eq.s32.totalorder %s17, 1
    %p150 = por %p148, %p149
    %p152 = scmp.ne.s32.totalorder %s135, %s151
    %p153 = scmp.eq.s32.totalorder %s17, 0
    %p154 = por %p152, %p153
    %p155 = scmp.le.s32.totalorder 1, %s11
    %p156 = scmp.lt.s32.totalorder %s11, 3
    %p157 = pnand %p155, %p156
    %p158 = pneg %p157
    // Predicated region
    $region9: #{_decoder_forward_impl.1} parent=5 // pred_check
      _
    $region10: #{_decoder_forward_impl.1} parent=5 // pred_check_branch
      %160 = sbr.rel (%p157) target = $region12
    $region11: #{_decoder_forward_impl.1} parent=5 // pred_region
      %s161 = ssub.s32 %s11, 1
      // Predicated region
      $region13: #{_decoder_forward_impl.1} parent=11 // pred_check
        %p162 = pneg %p58
      $region14: #{_decoder_forward_impl.1} parent=11 // pred_check_branch
        %164 = sbr.rel (%p162) target = $region16
      $region15: #{_decoder_forward_impl.1} parent=11 // pred_region
        _
      $region16: #{_decoder_forward_impl.1} parent=11 // pred_fallthru
        _
      // Predicated region
      $region17: #{_decoder_forward_impl.1} parent=11 // pred_check
        %p165 = pneg %p79
      $region18: #{_decoder_forward_impl.1} parent=11 // pred_check_branch
        %167 = sbr.rel (%p165) target = $region20
      $region19: #{_decoder_forward_impl.1} parent=11 // pred_region
        _
      $region20: #{_decoder_forward_impl.1} parent=11 // pred_fallthru
        _
      // Predicated region
      $region21: #{_decoder_forward_impl.1} parent=11 // pred_check
        %p168 = pneg %p100
      $region22: #{_decoder_forward_impl.1} parent=11 // pred_check_branch
        %170 = sbr.rel (%p168) target = $region24
      $region23: #{_decoder_forward_impl.1} parent=11 // pred_region
        _
      $region24: #{_decoder_forward_impl.1} parent=11 // pred_fallthru
        _
      // Predicated region
      $region25: #{_decoder_forward_impl.1} parent=11 // pred_check
        %p171 = pneg %p121
      $region26: #{_decoder_forward_impl.1} parent=11 // pred_check_branch
        %173 = sbr.rel (%p171) target = $region28
      $region27: #{_decoder_forward_impl.1} parent=11 // pred_region
        _
      $region28: #{_decoder_forward_impl.1} parent=11 // pred_fallthru
        _
    $region12: #{_decoder_forward_impl.1} parent=5 // pred_fallthru
      _
    %p174 = scmp.lt.s32.totalorder %s11, 2
    // Predicated region
    $region29: #{_decoder_forward_impl.1} parent=5 // pred_check
      %p175 = pneg %p174
    $region30: #{_decoder_forward_impl.1} parent=5 // pred_check_branch
      %177 = sbr.rel (%p175) target = $region32
    $region31: #{_decoder_forward_impl.1} parent=5 // pred_region
      // Predicated region
      $region33: #{_decoder_forward_impl.1} parent=31 // pred_check
        %p178 = pneg %p31
      $region34: #{_decoder_forward_impl.1} parent=31 // pred_check_branch
        %180 = sbr.rel (%p178) target = $region36
      $region35: #{_decoder_forward_impl.1} parent=31 // pred_region
        %s181 = smul.u32 16, %s11
        %p182 = scmp.lt.s32.totalorder %s181, 31
        %s183 = scalar_select %p182, %s181, 31
        %s184 = smul.addr %s183, 4
        %s185 = scalar_lea.vmem %s0, %s184
        %s186 = smul.u32 16, %s11
      $region36: #{_decoder_forward_impl.1} parent=31 // pred_fallthru
        _
    $region32: #{_decoder_forward_impl.1} parent=5 // pred_fallthru
      _
    %p187 = scmp.le.s32.totalorder 1, %s11
    %p188 = scmp.lt.s32.totalorder %s11, 3
    %p189 = pnand %p187, %p188
    %p190 = pneg %p189
    // Predicated region
    $region37: #{_decoder_forward_impl.1} parent=5 // pred_check
      _
    $region38: #{_decoder_forward_impl.1} parent=5 // pred_check_branch
      %192 = sbr.rel (%p189) target = $region40
    $region39: #{_decoder_forward_impl.1} parent=5 // pred_region
      %s193 = ssub.s32 %s11, 1
      %s194 = smul.u32 16, %s16
      %p195 = scmp.lt.s32.totalorder %s194, 31
      %s196 = scalar_select %p195, %s194, 31
      %s197 = smul.addr %s196, 4
      %s198 = scalar_lea.vmem %s0, %s197
      %p199 = pneg %p37
      %p200 = pneg %p34
      %p201 = pneg %p58
      %p202 = pneg %p55
      %p203 = pneg %p79
      %p204 = pneg %p76
      %p205 = pneg %p100
      %p206 = pneg %p97
      %p207 = pneg %p121
      %p208 = pneg %p118
      %p209 = pneg %p147
      %p210 = pneg %p144
      %s211 = smul.u32 16, %s16
      %p212 = scmp.lt.s32.totalorder %s211, 31
      %s213 = scalar_select %p212, %s211, 31
      %s214 = smul.addr %s213, 8
      %s215 = scalar_lea.vmem %s5, %s214
      %s216 = smul.u32 16, %s16
      %p217 = scmp.lt.s32.totalorder %s216, 31
      %s218 = scalar_select %p217, %s216, 31
      %s219 = smul.addr %s218, 4
      %s220 = scalar_lea.vmem %s0, %s219
      %s221 = smul.u32 16, %s16
      %s222 = smul.u32 16, %s16
      %p223 = scmp.lt.s32.totalorder %s222, 31
      %s224 = scalar_select %p223, %s222, 31
      %s225 = smul.addr %s224, 8
      %s226 = scalar_lea.vmem %s5, %s225
      %s227 = smul.u32 16, %s16
      %v229 = vld [vmem:[%s220] sm:$0xf]
      %v230 = vld [vmem:[%s220 + $0x4] sm:$0xf]
      %v231 = vld [vmem:[%s220 + $0x8] sm:$0xf]
      %v232 = vld [vmem:[%s220 + $0xc] sm:$0xf]
      %v233 = vld [vmem:[%s220 + $0x10] sm:$0xf]
      %v234 = vld [vmem:[%s220 + $0x14] sm:$0xf]
      %v235 = vld [vmem:[%s220 + $0x18] sm:$0xf]
      %v236 = vld [vmem:[%s220 + $0x1c] sm:$0xf]
      %v237 = vld [vmem:[%s220 + $0x20] sm:$0xf]
      %v238 = vld [vmem:[%s220 + $0x24] sm:$0xf]
      %v239 = vld [vmem:[%s220 + $0x28] sm:$0xf]
      %v240 = vld [vmem:[%s220 + $0x2c] sm:$0xf]
      %v241 = vld [vmem:[%s220 + $0x30] sm:$0xf]
      %v242 = vld [vmem:[%s220 + $0x34] sm:$0xf]
      %v243 = vld [vmem:[%s220 + $0x38] sm:$0xf]
      %v244 = vld [vmem:[%s220 + $0x3c] sm:$0xf]
      %v245 = vld [vmem:[%s1] sm:$0xf]
      %v246 = vld [vmem:[%s1 + $0x4] sm:$0xf]
      %v247 = vld [vmem:[%s1 + $0x8] sm:$0xf]
      %v248 = vld [vmem:[%s1 + $0xc] sm:$0xf]
      %v249 = vld [vmem:[%s2] sm:$0x1]
      %v251 = vlaneseq
      %v252 = vshrl.u32 %v251, 7
      %v253 = vsub.s32 0, %v252
      %v254 = vrot.slane %v249, %v253
      %v272 = vunpack.c.l.b16 %v229
      %v273 = vunpack.c.l.b16 %v230
      %v274 = vunpack.c.l.b16 %v231
      %v275 = vunpack.c.l.b16 %v232
      %v276 = vunpack.c.l.b16 %v233
      %v277 = vunpack.c.l.b16 %v234
      %v278 = vunpack.c.l.b16 %v235
      %v279 = vunpack.c.l.b16 %v236
      %v280 = vunpack.c.l.b16 %v237
      %v281 = vunpack.c.l.b16 %v238
      %v282 = vunpack.c.l.b16 %v239
      %v283 = vunpack.c.l.b16 %v240
      %v284 = vunpack.c.l.b16 %v241
      %v285 = vunpack.c.l.b16 %v242
      %v286 = vunpack.c.l.b16 %v243
      %v287 = vunpack.c.l.b16 %v244
      %v288 = vpack.c.b16 %v273, %v272
      %v289 = vpack.c.b16 %v275, %v274
      %v290 = vpack.c.b16 %v277, %v276
      %v291 = vpack.c.b16 %v279, %v278
      %v292 = vpack.c.b16 %v281, %v280
      %v293 = vpack.c.b16 %v283, %v282
      %v294 = vpack.c.b16 %v285, %v284
      %v295 = vpack.c.b16 %v287, %v286
      %v300 = vunpack.c.l.b16 %v245
      %v301 = vunpack.c.l.b16 %v246
      %v302 = vunpack.c.l.b16 %v247
      %v303 = vunpack.c.l.b16 %v248
      %v304 = vpack.c.b16 %v301, %v300
      %v305 = vpack.c.b16 %v303, %v302
      %vm308 = vcmask 261120
      %v310 = vsel %vm308, %v288, 0
      %v313 = vsel %vm308, %v289, 0
      %v316 = vsel %vm308, %v290, 0
      %v319 = vsel %vm308, %v291, 0
      %v322 = vsel %vm308, %v292, 0
      %v325 = vsel %vm308, %v293, 0
      %v328 = vsel %vm308, %v294, 0
      %v331 = vsel %vm308, %v295, 0
      %333 = vmatprep.subr.bf16.mxu0 0
      %334 = vmatpush1.bf16.msra.mxu0 %v304
      %335 = vmatprep.subr.bf16.mxu0 0
      %336 = vmatpush1.bf16.msra.mxu0 %v305
      %337 = vmatprep.subr.bf16.mxu0 0
      %338 = vmatpush1.bf16.msra.mxu0 0
      %339 = vmatprep.subr.bf16.mxu0 0
      %340 = vmatpush1.bf16.msra.mxu0 0
      %341 = vmatprep.subr.bf16.mxu0 0
      %342 = vmatpush1.bf16.msra.mxu0 0
      %343 = vmatprep.subr.bf16.mxu0 0
      %344 = vmatpush1.bf16.msra.mxu0 0
      %345 = vmatprep.subr.bf16.mxu0 0
      %346 = vmatpush1.bf16.msra.mxu0 0
      %347 = vmatprep.subr.bf16.mxu0 0
      %348 = vmatpush1.bf16.msra.mxu0 0
      %349 = vmatprep.subr.bf16.mxu0 0
      %350 = vmatpush1.bf16.msra.mxu0 0
      %351 = vmatprep.subr.bf16.mxu0 0
      %352 = vmatpush1.bf16.msra.mxu0 0
      %353 = vmatprep.subr.bf16.mxu0 0
      %354 = vmatpush1.bf16.msra.mxu0 0
      %355 = vmatprep.subr.bf16.mxu0 0
      %356 = vmatpush1.bf16.msra.mxu0 0
      %357 = vmatprep.subr.bf16.mxu0 0
      %358 = vmatpush1.bf16.msra.mxu0 0
      %359 = vmatprep.subr.bf16.mxu0 0
      %360 = vmatpush1.bf16.msra.mxu0 0
      %361 = vmatprep.subr.bf16.mxu0 0
      %362 = vmatpush1.bf16.msra.mxu0 0
      %363 = vmatprep.subr.bf16.mxu0 0
      %364 = vmatpush1.bf16.msra.mxu0 0
      %365 = vmatprep.mubr.bf16.mxu0 0
      %366 = vmatmul.mubr.bf16.gmra.mrb[0].mxu0 %v310
      %v367 = vpop.f32.mrb[0].mxu0
      %v368 = vadd.f32 %v254, %v367
      %v369 = vpop.f32.mrb[0].mxu0
      %v370 = vpop.f32.mrb[0].mxu0
      %v371 = vadd.f32 %v254, %v370
      %v372 = vpop.f32.mrb[0].mxu0
      %373 = vmatprep.mubr.bf16.mxu0 0
      %374 = vmatmul.mubr.bf16.gmra.mrb[0].mxu0 %v313
      %v375 = vpop.f32.mrb[0].mxu0
      %v376 = vadd.f32 %v254, %v375
      %v377 = vpop.f32.mrb[0].mxu0
      %v378 = vpop.f32.mrb[0].mxu0
      %v379 = vadd.f32 %v254, %v378
      %v380 = vpop.f32.mrb[0].mxu0
      %381 = vmatprep.mubr.bf16.mxu0 0
      %382 = vmatmul.mubr.bf16.gmra.mrb[0].mxu0 %v316
      %v383 = vpop.f32.mrb[0].mxu0
      %v384 = vadd.f32 %v254, %v383
      %v385 = vpop.f32.mrb[0].mxu0
      %v386 = vpop.f32.mrb[0].mxu0
      %v387 = vadd.f32 %v254, %v386
      %v388 = vpop.f32.mrb[0].mxu0
      %389 = vmatprep.mubr.bf16.mxu0 0
      %390 = vmatmul.mubr.bf16.gmra.mrb[0].mxu0 %v319
      %v391 = vpop.f32.mrb[0].mxu0
      %v392 = vadd.f32 %v254, %v391
      %v393 = vpop.f32.mrb[0].mxu0
      %v394 = vpop.f32.mrb[0].mxu0
      %v395 = vadd.f32 %v254, %v394
      %v396 = vpop.f32.mrb[0].mxu0
      %397 = vmatprep.mubr.bf16.mxu0 0
      %398 = vmatmul.mubr.bf16.gmra.mrb[0].mxu0 %v322
      %v399 = vpop.f32.mrb[0].mxu0
      %v400 = vadd.f32 %v254, %v399
      %v401 = vpop.f32.mrb[0].mxu0
      %v402 = vpop.f32.mrb[0].mxu0
      %v403 = vadd.f32 %v254, %v402
      %v404 = vpop.f32.mrb[0].mxu0
      %405 = vmatprep.mubr.bf16.mxu0 0
      %406 = vmatmul.mubr.bf16.gmra.mrb[0].mxu0 %v325
      %v407 = vpop.f32.mrb[0].mxu0
      %v408 = vadd.f32 %v254, %v407
      %v409 = vpop.f32.mrb[0].mxu0
      %v410 = vpop.f32.mrb[0].mxu0
      %v411 = vadd.f32 %v254, %v410
      %v412 = vpop.f32.mrb[0].mxu0
      %413 = vmatprep.mubr.bf16.mxu0 0
      %414 = vmatmul.mubr.bf16.gmra.mrb[0].mxu0 %v328
      %v415 = vpop.f32.mrb[0].mxu0
      %v416 = vadd.f32 %v254, %v415
      %v417 = vpop.f32.mrb[0].mxu0
      %v418 = vpop.f32.mrb[0].mxu0
      %v419 = vadd.f32 %v254, %v418
      %v420 = vpop.f32.mrb[0].mxu0
      %421 = vmatprep.mubr.bf16.mxu0 0
      %422 = vmatmul.mubr.bf16.gmra.mrb[0].mxu0 %v331
      %v423 = vpop.f32.mrb[0].mxu0
      %v424 = vadd.f32 %v254, %v423
      %v425 = vpop.f32.mrb[0].mxu0
      %v426 = vpop.f32.mrb[0].mxu0
      %v427 = vadd.f32 %v254, %v426
      %v428 = vpop.f32.mrb[0].mxu0
      %429 = vdwg.mxu0
      %v430 = vmax.f32 %v368, 0.0
      %v431 = vmax.f32 %v371, 0.0
      %v432 = vmax.f32 %v376, 0.0
      %v433 = vmax.f32 %v379, 0.0
      %v434 = vmax.f32 %v384, 0.0
      %v435 = vmax.f32 %v387, 0.0
      %v436 = vmax.f32 %v392, 0.0
      %v437 = vmax.f32 %v395, 0.0
      %v438 = vmax.f32 %v400, 0.0
      %v439 = vmax.f32 %v403, 0.0
      %v440 = vmax.f32 %v408, 0.0
      %v441 = vmax.f32 %v411, 0.0
      %v442 = vmax.f32 %v416, 0.0
      %v443 = vmax.f32 %v419, 0.0
      %v444 = vmax.f32 %v424, 0.0
      %v445 = vmax.f32 %v427, 0.0
      %v446 = vpack.c.bf16 %v431, %v430
      %v447 = vpack.c.bf16 %v433, %v432
      %v448 = vpack.c.bf16 %v435, %v434
      %v449 = vpack.c.bf16 %v437, %v436
      %v450 = vpack.c.bf16 %v439, %v438
      %v451 = vpack.c.bf16 %v441, %v440
      %v452 = vpack.c.bf16 %v443, %v442
      %v453 = vpack.c.bf16 %v445, %v444
      %v454 = vld [vmem:[%s3] sm:$0xf]
      %v455 = vld [vmem:[%s3 + $0x4] sm:$0xf]
      %v456 = vld [vmem:[%s3 + $0x8] sm:$0xf]
      %v457 = vld [vmem:[%s3 + $0xc] sm:$0xf]
      %v458 = vld [vmem:[%s3 + $0x10] sm:$0xf]
      %v459 = vld [vmem:[%s3 + $0x14] sm:$0xf]
      %v460 = vld [vmem:[%s3 + $0x18] sm:$0xf]
      %v461 = vld [vmem:[%s3 + $0x1c] sm:$0xf]
      %v462 = vld [vmem:[%s3 + $0x20] sm:$0xf]
      %v463 = vld [vmem:[%s3 + $0x24] sm:$0xf]
      %v464 = vld [vmem:[%s3 + $0x28] sm:$0xf]
      %v465 = vld [vmem:[%s3 + $0x2c] sm:$0xf]
      %v466 = vld [vmem:[%s3 + $0x30] sm:$0xf]
      %v467 = vld [vmem:[%s3 + $0x34] sm:$0xf]
      %v468 = vld [vmem:[%s3 + $0x38] sm:$0xf]
      %v469 = vld [vmem:[%s3 + $0x3c] sm:$0xf]
      %v470 = vld [vmem:[%s4] sm:$0x1]
      %v472 = vlaneseq
      %v473 = vshrl.u32 %v472, 7
      %v474 = vsub.s32 0, %v473
      %v475 = vrot.slane %v470, %v474
      %v493 = vunpack.c.l.b16 %v454
      %v494 = vunpack.c.l.b16 %v455
      %v495 = vunpack.c.l.b16 %v456
      %v496 = vunpack.c.l.b16 %v457
      %v497 = vunpack.c.l.b16 %v458
      %v498 = vunpack.c.l.b16 %v459
      %v499 = vunpack.c.l.b16 %v460
      %v500 = vunpack.c.l.b16 %v461
      %v501 = vunpack.c.l.b16 %v462
      %v502 = vunpack.c.l.b16 %v463
      %v503 = vunpack.c.l.b16 %v464
      %v504 = vunpack.c.l.b16 %v465
      %v505 = vunpack.c.l.b16 %v466
      %v506 = vunpack.c.l.b16 %v467
      %v507 = vunpack.c.l.b16 %v468
      %v508 = vunpack.c.l.b16 %v469
      %v509 = vpack.c.b16 %v494, %v493
      %v510 = vpack.c.b16 %v496, %v495
      %v511 = vpack.c.b16 %v498, %v497
      %v512 = vpack.c.b16 %v500, %v499
      %v513 = vpack.c.b16 %v502, %v501
      %v514 = vpack.c.b16 %v504, %v503
      %v515 = vpack.c.b16 %v506, %v505
      %v516 = vpack.c.b16 %v508, %v507
      %525 = vmatprep.subr.bf16.mxu0 0
      %526 = vmatpush1.bf16.msra.mxu0 %v509
      %527 = vmatprep.subr.bf16.mxu0 0
      %528 = vmatpush1.bf16.msra.mxu0 %v510
      %529 = vmatprep.subr.bf16.mxu0 0
      %530 = vmatpush1.bf16.msra.mxu0 %v511
      %531 = vmatprep.subr.bf16.mxu0 0
      %532 = vmatpush1.bf16.msra.mxu0 %v512
      %533 = vmatprep.subr.bf16.mxu0 0
      %534 = vmatpush1.bf16.msra.mxu0 %v513
      %535 = vmatprep.subr.bf16.mxu0 0
      %536 = vmatpush1.bf16.msra.mxu0 %v514
      %537 = vmatprep.subr.bf16.mxu0 0
      %538 = vmatpush1.bf16.msra.mxu0 %v515
      %539 = vmatprep.subr.bf16.mxu0 0
      %540 = vmatpush1.bf16.msra.mxu0 %v516
      %541 = vmatprep.subr.bf16.mxu0 0
      %542 = vmatpush1.bf16.msra.mxu0 0
      %543 = vmatprep.subr.bf16.mxu0 0
      %544 = vmatpush1.bf16.msra.mxu0 0
      %545 = vmatprep.subr.bf16.mxu0 0
      %546 = vmatpush1.bf16.msra.mxu0 0
      %547 = vmatprep.subr.bf16.mxu0 0
      %548 = vmatpush1.bf16.msra.mxu0 0
      %549 = vmatprep.subr.bf16.mxu0 0
      %550 = vmatpush1.bf16.msra.mxu0 0
      %551 = vmatprep.subr.bf16.mxu0 0
      %552 = vmatpush1.bf16.msra.mxu0 0
      %553 = vmatprep.subr.bf16.mxu0 0
      %554 = vmatpush1.bf16.msra.mxu0 0
      %555 = vmatprep.subr.bf16.mxu0 0
      %556 = vmatpush1.bf16.msra.mxu0 0
      %557 = vmatprep.mubr.bf16.mxu0 0
      %558 = vmatmul.mubr.bf16.gmra.mrb[0].mxu0 %v446
      %v559 = vpop.f32.mrb[0].mxu0
      %v560 = vadd.f32 %v475, %v559
      %v561 = vpop.f32.mrb[0].mxu0
      %v562 = vpop.f32.mrb[0].mxu0
      %v563 = vadd.f32 %v475, %v562
      %v564 = vpop.f32.mrb[0].mxu0
      %565 = vmatprep.mubr.bf16.mxu0 0
      %566 = vmatmul.mubr.bf16.gmra.mrb[0].mxu0 %v447
      %v567 = vpop.f32.mrb[0].mxu0
      %v568 = vadd.f32 %v475, %v567
      %v569 = vpop.f32.mrb[0].mxu0
      %v570 = vpop.f32.mrb[0].mxu0
      %v571 = vadd.f32 %v475, %v570
      %v572 = vpop.f32.mrb[0].mxu0
      %573 = vmatprep.mubr.bf16.mxu0 0
      %574 = vmatmul.mubr.bf16.gmra.mrb[0].mxu0 %v448
      %v575 = vpop.f32.mrb[0].mxu0
      %v576 = vadd.f32 %v475, %v575
      %v577 = vpop.f32.mrb[0].mxu0
      %v578 = vpop.f32.mrb[0].mxu0
      %v579 = vadd.f32 %v475, %v578
      %v580 = vpop.f32.mrb[0].mxu0
      %581 = vmatprep.mubr.bf16.mxu0 0
      %582 = vmatmul.mubr.bf16.gmra.mrb[0].mxu0 %v449
      %v583 = vpop.f32.mrb[0].mxu0
      %v584 = vadd.f32 %v475, %v583
      %v585 = vpop.f32.mrb[0].mxu0
      %v586 = vpop.f32.mrb[0].mxu0
      %v587 = vadd.f32 %v475, %v586
      %v588 = vpop.f32.mrb[0].mxu0
      %589 = vmatprep.mubr.bf16.mxu0 0
      %590 = vmatmul.mubr.bf16.gmra.mrb[0].mxu0 %v450
      %v591 = vpop.f32.mrb[0].mxu0
      %v592 = vadd.f32 %v475, %v591
      %v593 = vpop.f32.mrb[0].mxu0
      %v594 = vpop.f32.mrb[0].mxu0
      %v595 = vadd.f32 %v475, %v594
      %v596 = vpop.f32.mrb[0].mxu0
      %597 = vmatprep.mubr.bf16.mxu0 0
      %598 = vmatmul.mubr.bf16.gmra.mrb[0].mxu0 %v451
      %v599 = vpop.f32.mrb[0].mxu0
      %v600 = vadd.f32 %v475, %v599
      %v601 = vpop.f32.mrb[0].mxu0
      %v602 = vpop.f32.mrb[0].mxu0
      %v603 = vadd.f32 %v475, %v602
      %v604 = vpop.f32.mrb[0].mxu0
      %605 = vmatprep.mubr.bf16.mxu0 0
      %606 = vmatmul.mubr.bf16.gmra.mrb[0].mxu0 %v452
      %v607 = vpop.f32.mrb[0].mxu0
      %v608 = vadd.f32 %v475, %v607
      %v609 = vpop.f32.mrb[0].mxu0
      %v610 = vpop.f32.mrb[0].mxu0
      %v611 = vadd.f32 %v475, %v610
      %v612 = vpop.f32.mrb[0].mxu0
      %613 = vmatprep.mubr.bf16.mxu0 0
      %614 = vmatmul.mubr.bf16.gmra.mrb[0].mxu0 %v453
      %v615 = vpop.f32.mrb[0].mxu0
      %v616 = vadd.f32 %v475, %v615
      %v617 = vpop.f32.mrb[0].mxu0
      %v618 = vpop.f32.mrb[0].mxu0
      %v619 = vadd.f32 %v475, %v618
      %v620 = vpop.f32.mrb[0].mxu0
      %621 = vdwg.mxu0
      %vm622 = vcmask 130048
      %623 = vst.msk [vmem:[%s226] sm:$0xff] %vm622, %v560
      %624 = vst.msk [vmem:[%s226 + $0x8] sm:$0xff] %vm622, %v563
      %625 = vst.msk [vmem:[%s226 + $0x10] sm:$0xff] %vm622, %v568
      %626 = vst.msk [vmem:[%s226 + $0x18] sm:$0xff] %vm622, %v571
      %627 = vst.msk [vmem:[%s226 + $0x20] sm:$0xff] %vm622, %v576
      %628 = vst.msk [vmem:[%s226 + $0x28] sm:$0xff] %vm622, %v579
      %629 = vst.msk [vmem:[%s226 + $0x30] sm:$0xff] %vm622, %v584
      %630 = vst.msk [vmem:[%s226 + $0x38] sm:$0xff] %vm622, %v587
      %631 = vst.msk [vmem:[%s226 + $0x40] sm:$0xff] %vm622, %v592
      %632 = vst.msk [vmem:[%s226 + $0x48] sm:$0xff] %vm622, %v595
      %633 = vst.msk [vmem:[%s226 + $0x50] sm:$0xff] %vm622, %v600
      %634 = vst.msk [vmem:[%s226 + $0x58] sm:$0xff] %vm622, %v603
      %635 = vst.msk [vmem:[%s226 + $0x60] sm:$0xff] %vm622, %v608
      %636 = vst.msk [vmem:[%s226 + $0x68] sm:$0xff] %vm622, %v611
      %637 = vst.msk [vmem:[%s226 + $0x70] sm:$0xff] %vm622, %v616
      %638 = vst.msk [vmem:[%s226 + $0x78] sm:$0xff] %vm622, %v619
      %s639 = smul.u32 16, %s16
      %p640 = scmp.lt.s32.totalorder %s639, 31
      %s641 = scalar_select %p640, %s639, 31
      %s642 = smul.addr %s641, 8
      %s643 = scalar_lea.vmem %s5, %s642
      // Predicated region
      $region41: #{_decoder_forward_impl.1} parent=39 // pred_check
        %p644 = pneg %p144
      $region42: #{_decoder_forward_impl.1} parent=39 // pred_check_branch
        %646 = sbr.rel (%p644) target = $region44
      $region43: #{_decoder_forward_impl.1} parent=39 // pred_region
        %s647 = smul.u32 16, %s16
      $region44: #{_decoder_forward_impl.1} parent=39 // pred_fallthru
        _
    $region40: #{_decoder_forward_impl.1} parent=5 // pred_fallthru
      _
    %p648 = scmp.le.s32.totalorder 2, %s11
    // Predicated region
    $region45: #{_decoder_forward_impl.1} parent=5 // pred_check
      %p649 = pneg %p648
    $region46: #{_decoder_forward_impl.1} parent=5 // pred_check_branch
      %651 = sbr.rel (%p649) target = $region48
    $region47: #{_decoder_forward_impl.1} parent=5 // pred_region
      %s652 = ssub.s32 %s11, 2
      // Predicated region
      $region49: #{_decoder_forward_impl.1} parent=47 // pred_check
        %p653 = pneg %p150
      $region50: #{_decoder_forward_impl.1} parent=47 // pred_check_branch
        %655 = sbr.rel (%p653) target = $region52
      $region51: #{_decoder_forward_impl.1} parent=47 // pred_region
        %s656 = smul.u32 16, %s17
        %p657 = scmp.lt.s32.totalorder %s656, 31
        %s658 = scalar_select %p657, %s656, 31
        %s659 = smul.addr %s658, 8
        %s660 = scalar_lea.vmem %s5, %s659
      $region52: #{_decoder_forward_impl.1} parent=47 // pred_fallthru
        _
    $region48: #{_decoder_forward_impl.1} parent=5 // pred_fallthru
      _
  $region6: #{_decoder_forward_impl.1} parent=0 // loop_footer
    %s15 = sadd.s32 1, %s11
  $region7: #{_decoder_forward_impl.1} parent=0 // loop_footer_branch
    %10 = sbr.rel target = $region3
  $region8: #{_decoder_forward_impl.1} parent=0 // loop_exit
    _

// kernel: _decoder_forward_impl.1
$region0: #{_decoder_forward_impl.1}
  #allocation0 [shape = 'u32[]', space=smem, size = 0x4, offset = 0x4, fixed_abs, tag = 'smem constant byte address 0x4 - core index']
  #allocation1 [shape = 'u32[144,128]{1,0:T(1,128)}', space=vmem, size = 0x12000, scoped, tag = 'internal scratch']
  %s0 = inlined_call_operand.vmem [shape: bf16[256,32], index: 0, kind: input, shape index: {}]
  %s1 = inlined_call_operand.vmem [shape: bf16[32,128], index: 1, kind: input, shape index: {}]
  %s2 = inlined_call_operand.vmem [shape: f32[1,128], index: 2, kind: input, shape index: {}]
  %s3 = inlined_call_operand.vmem [shape: bf16[128,128], index: 3, kind: input, shape index: {}]
  %s4 = inlined_call_operand.vmem [shape: f32[1,128], index: 4, kind: input, shape index: {}]
  %s5 = inlined_call_operand.vmem [shape: f32[256,16], index: 5, kind: output, shape index: {}]
  %s6 = sld [smem:[#allocation0]]
  $region53: #{_decoder_forward_impl.1} parent=0
    _
  %s8 = ssub.s32 1, %s6
  %s9 = scalar_select 0, %s8, %s6
  loop: start=0, step=1, limit=4
  $region2: #{_decoder_forward_impl.1} parent=0 // loop_pre_header
    _
  $region3: #{_decoder_forward_impl.1} parent=0 // loop_header
    %s11 = sphi 0, %s15
    %p12 = scmp.ge.s32.totalorder %s11, 4
    %s21 = sphi 0, %s23
    %s24 = sphi 0, %s21
    %s25 = sphi 0, %s24
    %s41 = sphi 0, %s25
    %s45 = sphi 0, %s45
    %s47 = sphi 0, %s45
    %s48 = sphi 0, %s47
    %s62 = sphi 0, %s48
    %s66 = sphi 0, %s66
    %s68 = sphi 0, %s66
    %s69 = sphi 0, %s68
    %s83 = sphi 0, %s69
    %s87 = sphi 0, %s87
    %s89 = sphi 0, %s87
    %s90 = sphi 0, %s89
    %s104 = sphi 0, %s90
    %s108 = sphi 0, %s108
    %s110 = sphi 0, %s108
    %s111 = sphi 0, %s110
    %s125 = sphi 0, %s111
    %s131 = sphi 0, %s133
    %s134 = sphi 0, %s131
    %s135 = sphi 0, %s134
    %s151 = sphi 0, %s135
  $region4: #{_decoder_forward_impl.1} parent=0 // loop_header_branch
    %14 = sbr.rel (%p12) target = $region8
  $region5: #{_decoder_forward_impl.1} parent=0 // loop_body
    %s16 = ssub.s32 %s11, 1
    %s17 = ssub.s32 %s11, 2
    %s18 = sadd.s32 %s11, 1
    %s19 = ssub.s32 %s11, %s18
    %p20 = scmp.eq.s32.totalorder %s19, 0
    %s22 = sadd.s32 %s21, 1
    %s23 = scalar_select %p20, %s21, %s22
    %p26 = pneg %p20
    %p27 = scmp.eq.s32.totalorder %s11, 1
    %p28 = por %p26, %p27
    %p29 = scmp.ne.s32.totalorder %s21, %s24
    %p30 = scmp.eq.s32.totalorder %s11, 0
    %p31 = por %p29, %p30
    %p32 = scmp.ne.s32.totalorder %s21, %s24
    %p33 = scmp.eq.s32.totalorder %s16, 1
    %p34 = por %p32, %p33
    %p35 = scmp.ne.s32.totalorder %s24, %s25
    %p36 = scmp.eq.s32.totalorder %s16, 0
    %p37 = por %p35, %p36
    %p38 = scmp.ne.s32.totalorder %s24, %s25
    %p39 = scmp.eq.s32.totalorder %s17, 1
    %p40 = por %p38, %p39
    %p42 = scmp.ne.s32.totalorder %s25, %s41
    %p43 = scmp.eq.s32.totalorder %s17, 0
    %p44 = por %p42, %p43
    %s46 = sadd.s32 %s45, 1
    %p49 = scmp.eq.s32.totalorder %s11, 1
    %p50 = scmp.ne.s32.totalorder %s45, %s47
    %p51 = scmp.eq.s32.totalorder %s11, 0
    %p52 = por %p50, %p51
    %p53 = scmp.ne.s32.totalorder %s45, %s47
    %p54 = scmp.eq.s32.totalorder %s16, 1
    %p55 = por %p53, %p54
    %p56 = scmp.ne.s32.totalorder %s47, %s48
    %p57 = scmp.eq.s32.totalorder %s16, 0
    %p58 = por %p56, %p57
    %p59 = scmp.ne.s32.totalorder %s47, %s48
    %p60 = scmp.eq.s32.totalorder %s17, 1
    %p61 = por %p59, %p60
    %p63 = scmp.ne.s32.totalorder %s48, %s62
    %p64 = scmp.eq.s32.totalorder %s17, 0
    %p65 = por %p63, %p64
    %s67 = sadd.s32 %s66, 1
    %p70 = scmp.eq.s32.totalorder %s11, 1
    %p71 = scmp.ne.s32.totalorder %s66, %s68
    %p72 = scmp.eq.s32.totalorder %s11, 0
    %p73 = por %p71, %p72
    %p74 = scmp.ne.s32.totalorder %s66, %s68
    %p75 = scmp.eq.s32.totalorder %s16, 1
    %p76 = por %p74, %p75
    %p77 = scmp.ne.s32.totalorder %s68, %s69
    %p78 = scmp.eq.s32.totalorder %s16, 0
    %p79 = por %p77, %p78
    %p80 = scmp.ne.s32.totalorder %s68, %s69
    %p81 = scmp.eq.s32.totalorder %s17, 1
    %p82 = por %p80, %p81
    %p84 = scmp.ne.s32.totalorder %s69, %s83
    %p85 = scmp.eq.s32.totalorder %s17, 0
    %p86 = por %p84, %p85
    %s88 = sadd.s32 %s87, 1
    %p91 = scmp.eq.s32.totalorder %s11, 1
    %p92 = scmp.ne.s32.totalorder %s87, %s89
    %p93 = scmp.eq.s32.totalorder %s11, 0
    %p94 = por %p92, %p93
    %p95 = scmp.ne.s32.totalorder %s87, %s89
    %p96 = scmp.eq.s32.totalorder %s16, 1
    %p97 = por %p95, %p96
    %p98 = scmp.ne.s32.totalorder %s89, %s90
    %p99 = scmp.eq.s32.totalorder %s16, 0
    %p100 = por %p98, %p99
    %p101 = scmp.ne.s32.totalorder %s89, %s90
    %p102 = scmp.eq.s32.totalorder %s17, 1
    %p103 = por %p101, %p102
    %p105 = scmp.ne.s32.totalorder %s90, %s104
    %p106 = scmp.eq.s32.totalorder %s17, 0
    %p107 = por %p105, %p106
    %s109 = sadd.s32 %s108, 1
    %p112 = scmp.eq.s32.totalorder %s11, 1
    %p113 = scmp.ne.s32.totalorder %s108, %s110
    %p114 = scmp.eq.s32.totalorder %s11, 0
    %p115 = por %p113, %p114
    %p116 = scmp.ne.s32.totalorder %s108, %s110
    %p117 = scmp.eq.s32.totalorder %s16, 1
    %p118 = por %p116, %p117
    %p119 = scmp.ne.s32.totalorder %s110, %s111
    %p120 = scmp.eq.s32.totalorder %s16, 0
    %p121 = por %p119, %p120
    %p122 = scmp.ne.s32.totalorder %s110, %s111
    %p123 = scmp.eq.s32.totalorder %s17, 1
    %p124 = por %p122, %p123
    %p126 = scmp.ne.s32.totalorder %s111, %s125
    %p127 = scmp.eq.s32.totalorder %s17, 0
    %p128 = por %p126, %p127
    %s129 = ssub.s32 %s11, %s18
    %p130 = scmp.eq.s32.totalorder %s129, 0
    %s132 = sadd.s32 %s131, 1
    %s133 = scalar_select %p130, %s131, %s132
    %p136 = pneg %p130
    %p137 = scmp.eq.s32.totalorder %s11, 1
    %p138 = por %p136, %p137
    %p139 = scmp.ne.s32.totalorder %s131, %s134
    %p140 = scmp.eq.s32.totalorder %s11, 0
    %p141 = por %p139, %p140
    %p142 = scmp.ne.s32.totalorder %s131, %s134
    %p143 = scmp.eq.s32.totalorder %s16, 1
    %p144 = por %p142, %p143
    %p145 = scmp.ne.s32.totalorder %s134, %s135
    %p146 = scmp.eq.s32.totalorder %s16, 0
    %p147 = por %p145, %p146
    %p148 = scmp.ne.s32.totalorder %s134, %s135
    %p149 = scmp.eq.s32.totalorder %s17, 1
    %p150 = por %p148, %p149
    %p152 = scmp.ne.s32.totalorder %s135, %s151
    %p153 = scmp.eq.s32.totalorder %s17, 0
    %p154 = por %p152, %p153
    %p155 = scmp.le.s32.totalorder 1, %s11
    %p156 = scmp.lt.s32.totalorder %s11, 3
    %p157 = pnand %p155, %p156
    %p158 = pneg %p157
    // Predicated region
    $region9: #{_decoder_forward_impl.1} parent=5 // pred_check
      _
    $region10: #{_decoder_forward_impl.1} parent=5 // pred_check_branch
      %160 = sbr.rel (%p157) target = $region12
    $region11: #{_decoder_forward_impl.1} parent=5 // pred_region
      %s161 = ssub.s32 %s11, 1
      // Predicated region
      $region13: #{_decoder_forward_impl.1} parent=11 // pred_check
        %p162 = pneg %p58
      $region14: #{_decoder_forward_impl.1} parent=11 // pred_check_branch
        %164 = sbr.rel (%p162) target = $region16
      $region15: #{_decoder_forward_impl.1} parent=11 // pred_region
        _
      $region16: #{_decoder_forward_impl.1} parent=11 // pred_fallthru
        _
      // Predicated region
      $region17: #{_decoder_forward_impl.1} parent=11 // pred_check
        %p165 = pneg %p79
      $region18: #{_decoder_forward_impl.1} parent=11 // pred_check_branch
        %167 = sbr.rel (%p165) target = $region20
      $region19: #{_decoder_forward_impl.1} parent=11 // pred_region
        _
      $region20: #{_decoder_forward_impl.1} parent=11 // pred_fallthru
        _
      // Predicated region
      $region21: #{_decoder_forward_impl.1} parent=11 // pred_check
        %p168 = pneg %p100
      $region22: #{_decoder_forward_impl.1} parent=11 // pred_check_branch
        %170 = sbr.rel (%p168) target = $region24
      $region23: #{_decoder_forward_impl.1} parent=11 // pred_region
        _
      $region24: #{_decoder_forward_impl.1} parent=11 // pred_fallthru
        _
      // Predicated region
      $region25: #{_decoder_forward_impl.1} parent=11 // pred_check
        %p171 = pneg %p121
      $region26: #{_decoder_forward_impl.1} parent=11 // pred_check_branch
        %173 = sbr.rel (%p171) target = $region28
      $region27: #{_decoder_forward_impl.1} parent=11 // pred_region
        _
      $region28: #{_decoder_forward_impl.1} parent=11 // pred_fallthru
        _
    $region12: #{_decoder_forward_impl.1} parent=5 // pred_fallthru
      _
    %p174 = scmp.lt.s32.totalorder %s11, 2
    // Predicated region
    $region29: #{_decoder_forward_impl.1} parent=5 // pred_check
      %p175 = pneg %p174
    $region30: #{_decoder_forward_impl.1} parent=5 // pred_check_branch
      %177 = sbr.rel (%p175) target = $region32
    $region31: #{_decoder_forward_impl.1} parent=5 // pred_region
      // Predicated region
      $region33: #{_decoder_forward_impl.1} parent=31 // pred_check
        %p178 = pneg %p31
      $region34: #{_decoder_forward_impl.1} parent=31 // pred_check_branch
        %180 = sbr.rel (%p178) target = $region36
      $region35: #{_decoder_forward_impl.1} parent=31 // pred_region
        %s181 = smul.u32 16, %s11
        %p182 = scmp.lt.s32.totalorder %s181, 31
        %s183 = scalar_select %p182, %s181, 31
        %s184 = smul.addr %s183, 4
        %s185 = scalar_lea.vmem %s0, %s184
        %s186 = smul.u32 16, %s11
      $region36: #{_decoder_forward_impl.1} parent=31 // pred_fallthru
        _
    $region32: #{_decoder_forward_impl.1} parent=5 // pred_fallthru
      _
    %p187 = scmp.le.s32.totalorder 1, %s11
    %p188 = scmp.lt.s32.totalorder %s11, 3
    %p189 = pnand %p187, %p188
    %p190 = pneg %p189
    // Predicated region
    $region37: #{_decoder_forward_impl.1} parent=5 // pred_check
      _
    $region38: #{_decoder_forward_impl.1} parent=5 // pred_check_branch
      %192 = sbr.rel (%p189) target = $region40
    $region39: #{_decoder_forward_impl.1} parent=5 // pred_region
      %s193 = ssub.s32 %s11, 1
      %s194 = smul.u32 16, %s16
      %p195 = scmp.lt.s32.totalorder %s194, 31
      %s196 = scalar_select %p195, %s194, 31
      %s197 = smul.addr %s196, 4
      %s198 = scalar_lea.vmem %s0, %s197
      %p199 = pneg %p37
      %p200 = pneg %p34
      %p201 = pneg %p58
      %p202 = pneg %p55
      %p203 = pneg %p79
      %p204 = pneg %p76
      %p205 = pneg %p100
      %p206 = pneg %p97
      %p207 = pneg %p121
      %p208 = pneg %p118
      %p209 = pneg %p147
      %p210 = pneg %p144
      %s211 = smul.u32 16, %s16
      %p212 = scmp.lt.s32.totalorder %s211, 31
      %s213 = scalar_select %p212, %s211, 31
      %s214 = smul.addr %s213, 8
      %s215 = scalar_lea.vmem %s5, %s214
      %s216 = smul.u32 16, %s16
      %p217 = scmp.lt.s32.totalorder %s216, 31
      %s218 = scalar_select %p217, %s216, 31
      %s219 = smul.addr %s218, 4
      %s220 = scalar_lea.vmem %s0, %s219
      %s221 = smul.u32 16, %s16
      %s222 = smul.u32 16, %s16
      %p223 = scmp.lt.s32.totalorder %s222, 31
      %s224 = scalar_select %p223, %s222, 31
      %s225 = smul.addr %s224, 8
      %s226 = scalar_lea.vmem %s5, %s225
      %s227 = smul.u32 16, %s16
      %v229 = vld [vmem:[%s220] sm:$0xf]
      %v230 = vld [vmem:[%s220 + $0x4] sm:$0xf]
      %v231 = vld [vmem:[%s220 + $0x8] sm:$0xf]
      %v232 = vld [vmem:[%s220 + $0xc] sm:$0xf]
      %v233 = vld [vmem:[%s220 + $0x10] sm:$0xf]
      %v234 = vld [vmem:[%s220 + $0x14] sm:$0xf]
      %v235 = vld [vmem:[%s220 + $0x18] sm:$0xf]
      %v236 = vld [vmem:[%s220 + $0x1c] sm:$0xf]
      %v237 = vld [vmem:[%s220 + $0x20] sm:$0xf]
      %v238 = vld [vmem:[%s220 + $0x24] sm:$0xf]
      %v239 = vld [vmem:[%s220 + $0x28] sm:$0xf]
      %v240 = vld [vmem:[%s220 + $0x2c] sm:$0xf]
      %v241 = vld [vmem:[%s220 + $0x30] sm:$0xf]
      %v242 = vld [vmem:[%s220 + $0x34] sm:$0xf]
      %v243 = vld [vmem:[%s220 + $0x38] sm:$0xf]
      %v244 = vld [vmem:[%s220 + $0x3c] sm:$0xf]
      %v245 = vld [vmem:[%s1] sm:$0xf]
      %v246 = vld [vmem:[%s1 + $0x4] sm:$0xf]
      %v247 = vld [vmem:[%s1 + $0x8] sm:$0xf]
      %v248 = vld [vmem:[%s1 + $0xc] sm:$0xf]
      %v249 = vld [vmem:[%s2] sm:$0x1]
      %v251 = vlaneseq
      %v252 = vshrl.u32 %v251, 7
      %v253 = vsub.s32 0, %v252
      %v254 = vrot.slane %v249, %v253
      %v272 = vunpack.c.l.b16 %v229
      %v273 = vunpack.c.l.b16 %v230
      %v274 = vunpack.c.l.b16 %v231
      %v275 = vunpack.c.l.b16 %v232
      %v276 = vunpack.c.l.b16 %v233
      %v277 = vunpack.c.l.b16 %v234
      %v278 = vunpack.c.l.b16 %v235
      %v279 = vunpack.c.l.b16 %v236
      %v280 = vunpack.c.l.b16 %v237
      %v281 = vunpack.c.l.b16 %v238
      %v282 = vunpack.c.l.b16 %v239
      %v283 = vunpack.c.l.b16 %v240
      %v284 = vunpack.c.l.b16 %v241
      %v285 = vunpack.c.l.b16 %v242
      %v286 = vunpack.c.l.b16 %v243
      %v287 = vunpack.c.l.b16 %v244
      %v288 = vpack.c.b16 %v273, %v272
      %v289 = vpack.c.b16 %v275, %v274
      %v290 = vpack.c.b16 %v277, %v276
      %v291 = vpack.c.b16 %v279, %v278
      %v292 = vpack.c.b16 %v281, %v280
      %v293 = vpack.c.b16 %v283, %v282
      %v294 = vpack.c.b16 %v285, %v284
      %v295 = vpack.c.b16 %v287, %v286
      %v300 = vunpack.c.l.b16 %v245
      %v301 = vunpack.c.l.b16 %v246
      %v302 = vunpack.c.l.b16 %v247
      %v303 = vunpack.c.l.b16 %v248
      %v304 = vpack.c.b16 %v301, %v300
      %v305 = vpack.c.b16 %v303, %v302
      %vm308 = vcmask 261120
      %v310 = vsel %vm308, %v288, 0
      %v313 = vsel %vm308, %v289, 0
      %v316 = vsel %vm308, %v290, 0
      %v319 = vsel %vm308, %v291, 0
      %v322 = vsel %vm308, %v292, 0
      %v325 = vsel %vm308, %v293, 0
      %v328 = vsel %vm308, %v294, 0
      %v331 = vsel %vm308, %v295, 0
      %333 = vmatprep.subr.bf16.mxu0 0
      %334 = vmatpush1.bf16.msra.mxu0 %v304
      %335 = vmatprep.subr.bf16.mxu0 0
      %336 = vmatpush1.bf16.msra.mxu0 %v305
      %337 = vmatprep.subr.bf16.mxu0 0
      %338 = vmatpush1.bf16.msra.mxu0 0
      %339 = vmatprep.subr.bf16.mxu0 0
      %340 = vmatpush1.bf16.msra.mxu0 0
      %341 = vmatprep.subr.bf16.mxu0 0
      %342 = vmatpush1.bf16.msra.mxu0 0
      %343 = vmatprep.subr.bf16.mxu0 0
      %344 = vmatpush1.bf16.msra.mxu0 0
      %345 = vmatprep.subr.bf16.mxu0 0
      %346 = vmatpush1.bf16.msra.mxu0 0
      %347 = vmatprep.subr.bf16.mxu0 0
      %348 = vmatpush1.bf16.msra.mxu0 0
      %349 = vmatprep.subr.bf16.mxu0 0
      %350 = vmatpush1.bf16.msra.mxu0 0
      %351 = vmatprep.subr.bf16.mxu0 0
      %352 = vmatpush1.bf16.msra.mxu0 0
      %353 = vmatprep.subr.bf16.mxu0 0
      %354 = vmatpush1.bf16.msra.mxu0 0
      %355 = vmatprep.subr.bf16.mxu0 0
      %356 = vmatpush1.bf16.msra.mxu0 0
      %357 = vmatprep.subr.bf16.mxu0 0
      %358 = vmatpush1.bf16.msra.mxu0 0
      %359 = vmatprep.subr.bf16.mxu0 0
      %360 = vmatpush1.bf16.msra.mxu0 0
      %361 = vmatprep.subr.bf16.mxu0 0
      %362 = vmatpush1.bf16.msra.mxu0 0
      %363 = vmatprep.subr.bf16.mxu0 0
      %364 = vmatpush1.bf16.msra.mxu0 0
      %365 = vmatprep.mubr.bf16.mxu0 0
      %366 = vmatmul.mubr.bf16.gmra.mrb[0].mxu0 %v310
      %v367 = vpop.f32.mrb[0].mxu0
      %v368 = vadd.f32 %v254, %v367
      %v369 = vpop.f32.mrb[0].mxu0
      %v370 = vpop.f32.mrb[0].mxu0
      %v371 = vadd.f32 %v254, %v370
      %v372 = vpop.f32.mrb[0].mxu0
      %373 = vmatprep.mubr.bf16.mxu0 0
      %374 = vmatmul.mubr.bf16.gmra.mrb[0].mxu0 %v313
      %v375 = vpop.f32.mrb[0].mxu0
      %v376 = vadd.f32 %v254, %v375
      %v377 = vpop.f32.mrb[0].mxu0
      %v378 = vpop.f32.mrb[0].mxu0
      %v379 = vadd.f32 %v254, %v378
      %v380 = vpop.f32.mrb[0].mxu0
      %381 = vmatprep.mubr.bf16.mxu0 0
      %382 = vmatmul.mubr.bf16.gmra.mrb[0].mxu0 %v316
      %v383 = vpop.f32.mrb[0].mxu0
      %v384 = vadd.f32 %v254, %v383
      %v385 = vpop.f32.mrb[0].mxu0
      %v386 = vpop.f32.mrb[0].mxu0
      %v387 = vadd.f32 %v254, %v386
      %v388 = vpop.f32.mrb[0].mxu0
      %389 = vmatprep.mubr.bf16.mxu0 0
      %390 = vmatmul.mubr.bf16.gmra.mrb[0].mxu0 %v319
      %v391 = vpop.f32.mrb[0].mxu0
      %v392 = vadd.f32 %v254, %v391
      %v393 = vpop.f32.mrb[0].mxu0
      %v394 = vpop.f32.mrb[0].mxu0
      %v395 = vadd.f32 %v254, %v394
      %v396 = vpop.f32.mrb[0].mxu0
      %397 = vmatprep.mubr.bf16.mxu0 0
      %398 = vmatmul.mubr.bf16.gmra.mrb[0].mxu0 %v322
      %v399 = vpop.f32.mrb[0].mxu0
      %v400 = vadd.f32 %v254, %v399
      %v401 = vpop.f32.mrb[0].mxu0
      %v402 = vpop.f32.mrb[0].mxu0
      %v403 = vadd.f32 %v254, %v402
      %v404 = vpop.f32.mrb[0].mxu0
      %405 = vmatprep.mubr.bf16.mxu0 0
      %406 = vmatmul.mubr.bf16.gmra.mrb[0].mxu0 %v325
      %v407 = vpop.f32.mrb[0].mxu0
      %v408 = vadd.f32 %v254, %v407
      %v409 = vpop.f32.mrb[0].mxu0
      %v410 = vpop.f32.mrb[0].mxu0
      %v411 = vadd.f32 %v254, %v410
      %v412 = vpop.f32.mrb[0].mxu0
      %413 = vmatprep.mubr.bf16.mxu0 0
      %414 = vmatmul.mubr.bf16.gmra.mrb[0].mxu0 %v328
      %v415 = vpop.f32.mrb[0].mxu0
      %v416 = vadd.f32 %v254, %v415
      %v417 = vpop.f32.mrb[0].mxu0
      %v418 = vpop.f32.mrb[0].mxu0
      %v419 = vadd.f32 %v254, %v418
      %v420 = vpop.f32.mrb[0].mxu0
      %421 = vmatprep.mubr.bf16.mxu0 0
      %422 = vmatmul.mubr.bf16.gmra.mrb[0].mxu0 %v331
      %v423 = vpop.f32.mrb[0].mxu0
      %v424 = vadd.f32 %v254, %v423
      %v425 = vpop.f32.mrb[0].mxu0
      %v426 = vpop.f32.mrb[0].mxu0
      %v427 = vadd.f32 %v254, %v426
      %v428 = vpop.f32.mrb[0].mxu0
      %429 = vdwg.mxu0
      %v430 = vmax.f32 %v368, 0.0
      %v431 = vmax.f32 %v371, 0.0
      %v432 = vmax.f32 %v376, 0.0
      %v433 = vmax.f32 %v379, 0.0
      %v434 = vmax.f32 %v384, 0.0
      %v435 = vmax.f32 %v387, 0.0
      %v436 = vmax.f32 %v392, 0.0
      %v437 = vmax.f32 %v395, 0.0
      %v438 = vmax.f32 %v400, 0.0
      %v439 = vmax.f32 %v403, 0.0
      %v440 = vmax.f32 %v408, 0.0
      %v441 = vmax.f32 %v411, 0.0
      %v442 = vmax.f32 %v416, 0.0
      %v443 = vmax.f32 %v419, 0.0
      %v444 = vmax.f32 %v424, 0.0
      %v445 = vmax.f32 %v427, 0.0
      %v446 = vpack.c.bf16 %v431, %v430
      %v447 = vpack.c.bf16 %v433, %v432
      %v448 = vpack.c.bf16 %v435, %v434
      %v449 = vpack.c.bf16 %v437, %v436
      %v450 = vpack.c.bf16 %v439, %v438
      %v451 = vpack.c.bf16 %v441, %v440
      %v452 = vpack.c.bf16 %v443, %v442
      %v453 = vpack.c.bf16 %v445, %v444
      %v454 = vld [vmem:[%s3] sm:$0xf]
      %v455 = vld [vmem:[%s3 + $0x4] sm:$0xf]
      %v456 = vld [vmem:[%s3 + $0x8] sm:$0xf]
      %v457 = vld [vmem:[%s3 + $0xc] sm:$0xf]
      %v458 = vld [vmem:[%s3 + $0x10] sm:$0xf]
      %v459 = vld [vmem:[%s3 + $0x14] sm:$0xf]
      %v460 = vld [vmem:[%s3 + $0x18] sm:$0xf]
      %v461 = vld [vmem:[%s3 + $0x1c] sm:$0xf]
      %v462 = vld [vmem:[%s3 + $0x20] sm:$0xf]
      %v463 = vld [vmem:[%s3 + $0x24] sm:$0xf]
      %v464 = vld [vmem:[%s3 + $0x28] sm:$0xf]
      %v465 = vld [vmem:[%s3 + $0x2c] sm:$0xf]
      %v466 = vld [vmem:[%s3 + $0x30] sm:$0xf]
      %v467 = vld [vmem:[%s3 + $0x34] sm:$0xf]
      %v468 = vld [vmem:[%s3 + $0x38] sm:$0xf]
      %v469 = vld [vmem:[%s3 + $0x3c] sm:$0xf]
      %v470 = vld [vmem:[%s4] sm:$0x1]
      %v472 = vlaneseq
      %v473 = vshrl.u32 %v472, 7
      %v474 = vsub.s32 0, %v473
      %v475 = vrot.slane %v470, %v474
      %v493 = vunpack.c.l.b16 %v454
      %v494 = vunpack.c.l.b16 %v455
      %v495 = vunpack.c.l.b16 %v456
      %v496 = vunpack.c.l.b16 %v457
      %v497 = vunpack.c.l.b16 %v458
      %v498 = vunpack.c.l.b16 %v459
      %v499 = vunpack.c.l.b16 %v460
      %v500 = vunpack.c.l.b16 %v461
      %v501 = vunpack.c.l.b16 %v462
      %v502 = vunpack.c.l.b16 %v463
      %v503 = vunpack.c.l.b16 %v464
      %v504 = vunpack.c.l.b16 %v465
      %v505 = vunpack.c.l.b16 %v466
      %v506 = vunpack.c.l.b16 %v467
      %v507 = vunpack.c.l.b16 %v468
      %v508 = vunpack.c.l.b16 %v469
      %v509 = vpack.c.b16 %v494, %v493
      %v510 = vpack.c.b16 %v496, %v495
      %v511 = vpack.c.b16 %v498, %v497
      %v512 = vpack.c.b16 %v500, %v499
      %v513 = vpack.c.b16 %v502, %v501
      %v514 = vpack.c.b16 %v504, %v503
      %v515 = vpack.c.b16 %v506, %v505
      %v516 = vpack.c.b16 %v508, %v507
      %525 = vmatprep.subr.bf16.mxu0 0
      %526 = vmatpush1.bf16.msra.mxu0 %v509
      %527 = vmatprep.subr.bf16.mxu0 0
      %528 = vmatpush1.bf16.msra.mxu0 %v510
      %529 = vmatprep.subr.bf16.mxu0 0
      %530 = vmatpush1.bf16.msra.mxu0 %v511
      %531 = vmatprep.subr.bf16.mxu0 0
      %532 = vmatpush1.bf16.msra.mxu0 %v512
      %533 = vmatprep.subr.bf16.mxu0 0
      %534 = vmatpush1.bf16.msra.mxu0 %v513
      %535 = vmatprep.subr.bf16.mxu0 0
      %536 = vmatpush1.bf16.msra.mxu0 %v514
      %537 = vmatprep.subr.bf16.mxu0 0
      %538 = vmatpush1.bf16.msra.mxu0 %v515
      %539 = vmatprep.subr.bf16.mxu0 0
      %540 = vmatpush1.bf16.msra.mxu0 %v516
      %541 = vmatprep.subr.bf16.mxu0 0
      %542 = vmatpush1.bf16.msra.mxu0 0
      %543 = vmatprep.subr.bf16.mxu0 0
      %544 = vmatpush1.bf16.msra.mxu0 0
      %545 = vmatprep.subr.bf16.mxu0 0
      %546 = vmatpush1.bf16.msra.mxu0 0
      %547 = vmatprep.subr.bf16.mxu0 0
      %548 = vmatpush1.bf16.msra.mxu0 0
      %549 = vmatprep.subr.bf16.mxu0 0
      %550 = vmatpush1.bf16.msra.mxu0 0
      %551 = vmatprep.subr.bf16.mxu0 0
      %552 = vmatpush1.bf16.msra.mxu0 0
      %553 = vmatprep.subr.bf16.mxu0 0
      %554 = vmatpush1.bf16.msra.mxu0 0
      %555 = vmatprep.subr.bf16.mxu0 0
      %556 = vmatpush1.bf16.msra.mxu0 0
      %557 = vmatprep.mubr.bf16.mxu0 0
      %558 = vmatmul.mubr.bf16.gmra.mrb[0].mxu0 %v446
      %v559 = vpop.f32.mrb[0].mxu0
      %v560 = vadd.f32 %v475, %v559
      %v561 = vpop.f32.mrb[0].mxu0
      %v562 = vpop.f32.mrb[0].mxu0
      %v563 = vadd.f32 %v475, %v562
      %v564 = vpop.f32.mrb[0].mxu0
      %565 = vmatprep.mubr.bf16.mxu0 0
      %566 = vmatmul.mubr.bf16.gmra.mrb[0].mxu0 %v447
      %v567 = vpop.f32.mrb[0].mxu0
      %v568 = vadd.f32 %v475, %v567
      %v569 = vpop.f32.mrb[0].mxu0
      %v570 = vpop.f32.mrb[0].mxu0
      %v571 = vadd.f32 %v475, %v570
      %v572 = vpop.f32.mrb[0].mxu0
      %573 = vmatprep.mubr.bf16.mxu0 0
      %574 = vmatmul.mubr.bf16.gmra.mrb[0].mxu0 %v448
      %v575 = vpop.f32.mrb[0].mxu0
      %v576 = vadd.f32 %v475, %v575
      %v577 = vpop.f32.mrb[0].mxu0
      %v578 = vpop.f32.mrb[0].mxu0
      %v579 = vadd.f32 %v475, %v578
      %v580 = vpop.f32.mrb[0].mxu0
      %581 = vmatprep.mubr.bf16.mxu0 0
      %582 = vmatmul.mubr.bf16.gmra.mrb[0].mxu0 %v449
      %v583 = vpop.f32.mrb[0].mxu0
      %v584 = vadd.f32 %v475, %v583
      %v585 = vpop.f32.mrb[0].mxu0
      %v586 = vpop.f32.mrb[0].mxu0
      %v587 = vadd.f32 %v475, %v586
      %v588 = vpop.f32.mrb[0].mxu0
      %589 = vmatprep.mubr.bf16.mxu0 0
      %590 = vmatmul.mubr.bf16.gmra.mrb[0].mxu0 %v450
      %v591 = vpop.f32.mrb[0].mxu0
      %v592 = vadd.f32 %v475, %v591
      %v593 = vpop.f32.mrb[0].mxu0
      %v594 = vpop.f32.mrb[0].mxu0
      %v595 = vadd.f32 %v475, %v594
      %v596 = vpop.f32.mrb[0].mxu0
      %597 = vmatprep.mubr.bf16.mxu0 0
      %598 = vmatmul.mubr.bf16.gmra.mrb[0].mxu0 %v451
      %v599 = vpop.f32.mrb[0].mxu0
      %v600 = vadd.f32 %v475, %v599
      %v601 = vpop.f32.mrb[0].mxu0
      %v602 = vpop.f32.mrb[0].mxu0
      %v603 = vadd.f32 %v475, %v602
      %v604 = vpop.f32.mrb[0].mxu0
      %605 = vmatprep.mubr.bf16.mxu0 0
      %606 = vmatmul.mubr.bf16.gmra.mrb[0].mxu0 %v452
      %v607 = vpop.f32.mrb[0].mxu0
      %v608 = vadd.f32 %v475, %v607
      %v609 = vpop.f32.mrb[0].mxu0
      %v610 = vpop.f32.mrb[0].mxu0
      %v611 = vadd.f32 %v475, %v610
      %v612 = vpop.f32.mrb[0].mxu0
      %613 = vmatprep.mubr.bf16.mxu0 0
      %614 = vmatmul.mubr.bf16.gmra.mrb[0].mxu0 %v453
      %v615 = vpop.f32.mrb[0].mxu0
      %v616 = vadd.f32 %v475, %v615
      %v617 = vpop.f32.mrb[0].mxu0
      %v618 = vpop.f32.mrb[0].mxu0
      %v619 = vadd.f32 %v475, %v618
      %v620 = vpop.f32.mrb[0].mxu0
      %621 = vdwg.mxu0
      %vm622 = vcmask 130048
      %623 = vst.msk [vmem:[%s226] sm:$0xff] %vm622, %v560
      %624 = vst.msk [vmem:[%s226 + $0x8] sm:$0xff] %vm622, %v563
      %625 = vst.msk [vmem:[%s226 + $0x10] sm:$0xff] %vm622, %v568
      %626 = vst.msk [vmem:[%s226 + $0x18] sm:$0xff] %vm622, %v571
      %627 = vst.msk [vmem:[%s226 + $0x20] sm:$0xff] %vm622, %v576
      %628 = vst.msk [vmem:[%s226 + $0x28] sm:$0xff] %vm622, %v579
      %629 = vst.msk [vmem:[%s226 + $0x30] sm:$0xff] %vm622, %v584
      %630 = vst.msk [vmem:[%s226 + $0x38] sm:$0xff] %vm622, %v587
      %631 = vst.msk [vmem:[%s226 + $0x40] sm:$0xff] %vm622, %v592
      %632 = vst.msk [vmem:[%s226 + $0x48] sm:$0xff] %vm622, %v595
      %633 = vst.msk [vmem:[%s226 + $0x50] sm:$0xff] %vm622, %v600
      %634 = vst.msk [vmem:[%s226 + $0x58] sm:$0xff] %vm622, %v603
      %635 = vst.msk [vmem:[%s226 + $0x60] sm:$0xff] %vm622, %v608
      %636 = vst.msk [vmem:[%s226 + $0x68] sm:$0xff] %vm622, %v611
      %637 = vst.msk [vmem:[%s226 + $0x70] sm:$0xff] %vm622, %v616
      %638 = vst.msk [vmem:[%s226 + $0x78] sm:$0xff] %vm622, %v619
      %s639 = smul.u32 16, %s16
      %p640 = scmp.lt.s32.totalorder %s639, 31
      %s641 = scalar_select %p640, %s639, 31
      %s642 = smul.addr %s641, 8
      %s643 = scalar_lea.vmem %s5, %s642
      // Predicated region
      $region41: #{_decoder_forward_impl.1} parent=39 // pred_check
        %p644 = pneg %p144
      $region42: #{_decoder_forward_impl.1} parent=39 // pred_check_branch
        %646 = sbr.rel (%p644) target = $region44
      $region43: #{_decoder_forward_impl.1} parent=39 // pred_region
        %s647 = smul.u32 16, %s16
      $region44: #{_decoder_forward_impl.1} parent=39 // pred_fallthru
        _
    $region40: #{_decoder_forward_impl.1} parent=5 // pred_fallthru
      _
    %p648 = scmp.le.s32.totalorder 2, %s11
    // Predicated region
    $region45: #{_decoder_forward_impl.1} parent=5 // pred_check
      %p649 = pneg %p648
    $region46: #{_decoder_forward_impl.1} parent=5 // pred_check_branch
      %651 = sbr.rel (%p649) target = $region48
    $region47: #{_decoder_forward_impl.1} parent=5 // pred_region
      %s652 = ssub.s32 %s11, 2
      // Predicated region
      $region49: #{_decoder_forward_impl.1} parent=47 // pred_check
        %p653 = pneg %p150
      $region50: #{_decoder_forward_impl.1} parent=47 // pred_check_branch
        %655 = sbr.rel (%p653) target = $region52
      $region51: #{_decoder_forward_impl.1} parent=47 // pred_region
        %s656 = smul.u32 16, %s17
        %p657 = scmp.lt.s32.totalorder %s656, 31
        %s658 = scalar_select %p657, %s656, 31
        %s659 = smul.addr %s658, 8
        %s660 = scalar_lea.vmem %s5, %s659
      $region52: #{_decoder_forward_impl.1} parent=47 // pred_fallthru
        _
    $region48: #{_decoder_forward_impl.1} parent=5 // pred_fallthru
      _
  $region6: #{_decoder_forward_impl.1} parent=0 // loop_footer
    %s15 = sadd.s32 1, %s11
  $region7: #{_decoder_forward_impl.1} parent=0 // loop_footer_branch
    %10 = sbr.rel target = $region3
  $region8: #{_decoder_forward_impl.1} parent=0 // loop_exit
    _

</llo_original>
